<compile_context>
chip_gen: v6e
topology: v6e:2x2x1
jax: 0.10.0
libtpu: 0.0.40
codegen_flags: <defaults>
</compile_context>

<pallas_src>
import functools

import jax
import jax.numpy as jnp
from jax.experimental import pallas as pl
from jax.experimental.pallas import tpu as pltpu

_TARGET_F32_BLOCK = 1 << 20            # ~1 MiB of f32 per block
_VMEM_LIMIT = 32 * 1024 * 1024         # safe on v5e/v6e (128 MiB) and v7x (64 MiB)


def _blur_flat_kernel(x_ref, o_ref, *, w):
    """Blur a (TB, H*W) block; each row is one flattened (H, W) plane."""
    x = x_ref[...].astype(jnp.float32)
    tb, hw = x.shape
    pos = jax.lax.broadcasted_iota(jnp.int32, (tb, hw), 1)
    col = pos % w

    # Horizontal [1,2,1] pass: neighbors at j-1 / j+1.  The roll wraps across
    # row / plane boundaries; the masks restore zero padding at the edges.
    left = jnp.where(col == 0, 0.0, pltpu.roll(x, shift=1, axis=1))
    right = jnp.where(col == w - 1, 0.0, pltpu.roll(x, shift=hw - 1, axis=1))
    row = left + 2.0 * x + right

    # Vertical [1,2,1] pass: neighbors at flat offsets -W / +W, zeroed at the
    # top / bottom rows.  1/16 folded into the coefficients.
    up = jnp.where(pos < w, 0.0, pltpu.roll(row, shift=w, axis=1))
    down = jnp.where(pos >= hw - w, 0.0, pltpu.roll(row, shift=hw - w, axis=1))
    o_ref[...] = (0.0625 * (up + down) + 0.125 * row).astype(o_ref.dtype)


def _blur_planes_kernel(x_ref, o_ref):
    """Generic fallback: blur a (TB, H, W) block via slice+concat shifts."""
    x = x_ref[...].astype(jnp.float32)
    tb, h, w = x.shape
    zcol = jnp.zeros((tb, h, 1), jnp.float32)
    left = jnp.concatenate([zcol, x[:, :, :-1]], axis=2)
    right = jnp.concatenate([x[:, :, 1:], zcol], axis=2)
    row = left + 2.0 * x + right
    zrow = jnp.zeros((tb, 1, w), jnp.float32)
    up = jnp.concatenate([zrow, row[:, :-1, :]], axis=1)
    down = jnp.concatenate([row[:, 1:, :], zrow], axis=1)
    o_ref[...] = (0.0625 * (up + down) + 0.125 * row).astype(o_ref.dtype)


def _flat_tile(nc, f32_plane):
    """Planes per block for the flattened (NC, H*W) layout, or None."""
    if nc * f32_plane <= _TARGET_F32_BLOCK:
        return nc                                    # whole axis in one block
    tb_fit = _TARGET_F32_BLOCK // f32_plane          # VMEM-budget cap
    if tb_fit < 8 or nc < 8:
        return None          # can't honor the 8-sublane block-shape rule
    tb = min(tb_fit, max(8, nc // 8))                # keep >= ~8 grid steps
    tb = max(8, (tb // 8) * 8)                       # sublane dim: multiple of 8
    return min(tb, nc)


def blur(image):
    """Depthwise 3x3 binomial blur with zero padding.  image: (N, C, H, W)."""
    n, c, h, w = image.shape
    nc, hw = n * c, h * w
    itemsize = jnp.dtype(image.dtype).itemsize
    f32_plane = hw * 4

    cost = pl.CostEstimate(
        flops=10 * nc * hw,                  # two [1,2,1] passes + scaling
        transcendentals=0,
        bytes_accessed=2 * nc * hw * itemsize,
    )
    cparams = pltpu.CompilerParams(
        dimension_semantics=("parallel",),   # plane tiles shard across TCs
        vmem_limit_bytes=_VMEM_LIMIT,
    )

    tb = _flat_tile(nc, f32_plane) if hw % 128 == 0 else None
    if tb is not None:
        # Lane-dense fast path: (NC, H*W) planes, roll-based shifts.
        x = image.reshape(nc, hw)
        out = pl.pallas_call(
            functools.partial(_blur_flat_kernel, w=w),
            out_shape=jax.ShapeDtypeStruct((nc, hw), image.dtype),
            grid_spec=pltpu.PrefetchScalarGridSpec(
                num_scalar_prefetch=0,
                grid=(pl.cdiv(nc, tb),),
                in_specs=[pl.BlockSpec((tb, hw), lambda i: (i, 0))],
                out_specs=pl.BlockSpec((tb, hw), lambda i: (i, 0)),
            ),
            compiler_params=cparams,
            cost_estimate=cost,
        )(x)
        return out.reshape(n, c, h, w)

    # Fallback layout: (NC, H, W) blocks; H, W span the full dims so any TB
    # is a legal block shape (covers H*W % 128 != 0 and very large planes).
    tb = max(1, min(nc, _TARGET_F32_BLOCK // f32_plane, max(1, nc // 8)))
    x = image.reshape(nc, h, w)
    out = pl.pallas_call(
        _blur_planes_kernel,
        out_shape=jax.ShapeDtypeStruct((nc, h, w), image.dtype),
        grid_spec=pltpu.PrefetchScalarGridSpec(
            num_scalar_prefetch=0,
            grid=(pl.cdiv(nc, tb),),
            in_specs=[pl.BlockSpec((tb, h, w), lambda i: (i, 0, 0))],
            out_specs=pl.BlockSpec((tb, h, w), lambda i: (i, 0, 0)),
        ),
        compiler_params=cparams,
        cost_estimate=cost,
    )(x)
    return out.reshape(n, c, h, w)


if __name__ == "__main__":
    key = jax.random.PRNGKey(0)
    N, C, H, W = 2, 4, 16, 16
    image = jax.random.normal(key, (N, C, H, W), dtype=jnp.float32)

    out = jax.block_until_ready(blur(image))

    # Pure-JAX reference: depthwise conv2d with the same fixed kernel.
    k = jnp.array([[1.0, 2.0, 1.0],
                   [2.0, 4.0, 2.0],
                   [1.0, 2.0, 1.0]], dtype=jnp.float32) / 16.0
    kern = jnp.tile(k.reshape(1, 1, 3, 3), (C, 1, 1, 1))   # (C, 1, 3, 3) OIHW
    ref = jax.lax.conv_general_dilated(
        image, kern,
        window_strides=(1, 1),
        padding=((1, 1), (1, 1)),
        dimension_numbers=("NCHW", "OIHW", "NCHW"),
        feature_group_count=C,
    )

    assert out.shape == (N, C, H, W)
    assert jnp.allclose(out, ref, atol=1e-5), "mismatch vs conv reference"
    print("KERNEL_OK")
</pallas_src>

<mosaic_0001>
module attributes {stable_mosaic.version = 11 : i64} {
  func.func @_blur_flat_kernel(%arg0: i32, %arg1: memref<8x256xf32, #tpu.memory_space<vmem>>, %arg2: memref<8x256xf32, #tpu.memory_space<vmem>>) attributes {dimension_semantics = [#tpu.dimension_semantics<parallel>], iteration_bounds = array<i64: 1>, scalar_prefetch = 0 : i64, scratch_operands = 0 : i64, tpu.core_type = #tpu.core_type<tc>, window_params = [{transform_indices = @transform_0, window_bounds = array<i64: 8, 256>}, {transform_indices = @transform_1, window_bounds = array<i64: 8, 256>}]} {
    %c0 = arith.constant 0 : index
    %c0_0 = arith.constant 0 : index
    %0 = vector.load %arg1[%c0, %c0_0] : memref<8x256xf32, #tpu.memory_space<vmem>>, vector<8x256xf32>
    %1 = tpu.iota {dimensions = array<i32: 1>} : vector<8x256xi32>
    %c16_i32 = arith.constant 16 : i32
    %c0_i32 = arith.constant 0 : i32
    %2 = arith.cmpi eq, %c16_i32, %c0_i32 : i32
    %c1_i32 = arith.constant 1 : i32
    %3 = arith.select %2, %c1_i32, %c16_i32 : i32
    %4 = vector.broadcast %3 : i32 to vector<8x256xi32>
    %5 = arith.remsi %1, %4 : vector<8x256xi32>
    %c0_i32_1 = arith.constant 0 : i32
    %6 = vector.broadcast %c0_i32_1 : i32 to vector<8x256xi32>
    %7 = arith.cmpi ne, %5, %6 : vector<8x256xi32>
    %c0_i32_2 = arith.constant 0 : i32
    %8 = vector.broadcast %c0_i32_2 : i32 to vector<8x256xi32>
    %9 = arith.cmpi slt, %5, %8 : vector<8x256xi32>
    %c0_i32_3 = arith.constant 0 : i32
    %10 = arith.cmpi slt, %3, %c0_i32_3 : i32
    %11 = vector.broadcast %10 : i1 to vector<8x256xi1>
    %12 = vector.broadcast %11 : vector<8x256xi1> to vector<8x256xi1>
    %13 = arith.xori %9, %12 : vector<8x256xi1>
    %14 = arith.andi %13, %7 : vector<8x256xi1>
    %15 = vector.broadcast %3 : i32 to vector<8x256xi32>
    %16 = arith.addi %5, %15 : vector<8x256xi32>
    %17 = arith.select %14, %16, %5 : vector<8x256xi1>, vector<8x256xi32>
    %c0_i32_4 = arith.constant 0 : i32
    %18 = vector.broadcast %c0_i32_4 : i32 to vector<8x256xi32>
    %19 = arith.cmpi eq, %17, %18 : vector<8x256xi32>
    %c1_i32_5 = arith.constant 1 : i32
    %20 = tpu.dynamic_rotate %0 by %c1_i32_5 dim 1 : vector<8x256xf32>, i32 -> vector<8x256xf32>
    %cst = arith.constant 0.000000e+00 : f32
    %21 = vector.broadcast %cst : f32 to vector<8x256xf32>
    %22 = arith.select %19, %21, %20 : vector<8x256xi1>, vector<8x256xf32>
    %c15_i32 = arith.constant 15 : i32
    %23 = vector.broadcast %c15_i32 : i32 to vector<8x256xi32>
    %24 = arith.cmpi eq, %17, %23 : vector<8x256xi32>
    %c255_i32 = arith.constant 255 : i32
    %25 = tpu.dynamic_rotate %0 by %c255_i32 dim 1 : vector<8x256xf32>, i32 -> vector<8x256xf32>
    %cst_6 = arith.constant 0.000000e+00 : f32
    %26 = vector.broadcast %cst_6 : f32 to vector<8x256xf32>
    %27 = arith.select %24, %26, %25 : vector<8x256xi1>, vector<8x256xf32>
    %cst_7 = arith.constant 2.000000e+00 : f32
    %28 = vector.broadcast %cst_7 : f32 to vector<8x256xf32>
    %29 = arith.mulf %28, %0 : vector<8x256xf32>
    %30 = arith.addf %22, %29 : vector<8x256xf32>
    %31 = arith.addf %30, %27 : vector<8x256xf32>
    %c16_i32_8 = arith.constant 16 : i32
    %32 = vector.broadcast %c16_i32_8 : i32 to vector<8x256xi32>
    %33 = arith.cmpi slt, %1, %32 : vector<8x256xi32>
    %c16_i32_9 = arith.constant 16 : i32
    %34 = tpu.dynamic_rotate %31 by %c16_i32_9 dim 1 : vector<8x256xf32>, i32 -> vector<8x256xf32>
    %cst_10 = arith.constant 0.000000e+00 : f32
    %35 = vector.broadcast %cst_10 : f32 to vector<8x256xf32>
    %36 = arith.select %33, %35, %34 : vector<8x256xi1>, vector<8x256xf32>
    %c240_i32 = arith.constant 240 : i32
    %37 = vector.broadcast %c240_i32 : i32 to vector<8x256xi32>
    %38 = arith.cmpi sge, %1, %37 : vector<8x256xi32>
    %c240_i32_11 = arith.constant 240 : i32
    %39 = tpu.dynamic_rotate %31 by %c240_i32_11 dim 1 : vector<8x256xf32>, i32 -> vector<8x256xf32>
    %cst_12 = arith.constant 0.000000e+00 : f32
    %40 = vector.broadcast %cst_12 : f32 to vector<8x256xf32>
    %41 = arith.select %38, %40, %39 : vector<8x256xi1>, vector<8x256xf32>
    %42 = arith.addf %36, %41 : vector<8x256xf32>
    %cst_13 = arith.constant 6.250000e-02 : f32
    %43 = vector.broadcast %cst_13 : f32 to vector<8x256xf32>
    %44 = arith.mulf %43, %42 : vector<8x256xf32>
    %cst_14 = arith.constant 1.250000e-01 : f32
    %45 = vector.broadcast %cst_14 : f32 to vector<8x256xf32>
    %46 = arith.mulf %45, %31 : vector<8x256xf32>
    %47 = arith.addf %44, %46 : vector<8x256xf32>
    %c0_15 = arith.constant 0 : index
    %c0_16 = arith.constant 0 : index
    %48 = vector.load %arg2[%c0_15, %c0_16] : memref<8x256xf32, #tpu.memory_space<vmem>>, vector<8x256xf32>
    tpu.vector_store %arg2[%c0_15, %c0_16], %47 {strides = array<i32>} : memref<8x256xf32, #tpu.memory_space<vmem>>, vector<8x256xf32>,
    return
  }
  func.func @transform_0(%arg0: i32) -> (i32, i32) {
    %c0_i32 = arith.constant 0 : i32
    %c0_i32_0 = arith.constant 0 : i32
    return %arg0, %c0_i32 : i32, i32
  }
  func.func @transform_1(%arg0: i32) -> (i32, i32) {
    %c0_i32 = arith.constant 0 : i32
    %c0_i32_0 = arith.constant 0 : i32
    return %arg0, %c0_i32 : i32, i32
  }
}

</mosaic_0001>

<llo_original>
// kernel: tpu_custom_call.1
$region0: #{tpu_custom_call.1}
  #allocation0 [shape = 'u32[]', space=smem, size = 0x4, offset = 0x4, fixed_abs, tag = 'smem constant byte address 0x4 - core index']
  #allocation1 [shape = 'u32[144,128]{1,0:T(1,128)}', space=vmem, size = 0x12000, scoped, tag = 'internal scratch']
  %s0 = inlined_call_operand.hbm [shape: f32[8,256], index: 0, kind: input, shape index: {}]
  %s1 = inlined_call_operand.hbm [shape: f32[8,256], index: 1, kind: output, shape index: {}]
  %s2 = sld [smem:[#allocation0]]
  $region18: #{tpu_custom_call.1} parent=0
    _
  %s4 = ssub.s32 1, %s2
  %s5 = scalar_select 0, %s4, %s2
  $region1: #{tpu_custom_call.1} parent=0
    #allocation2 [shape = 'u8[8192]{0}', space=vmem, size = 0x2000, scoped, tag = 'input window, operand 0, single buffered']
    #allocation3 [shape = 's32[1]{0}', space=sflag, size = 0x4, scoped, tag = 'scoped memory for tpu_custom_call.1']
    #allocation4 [shape = 's32[1]{0}', space=sflag, size = 0x4, scoped, tag = 'scoped memory for tpu_custom_call.1']
    #allocation5 [shape = 'u8[8192]{0}', space=vmem, size = 0x2000, scoped, tag = 'output window, operand 0, single buffered']
    %6 = vsyncpa [#allocation3], 0
    %7 = vsyncpa [#allocation4], 0
    // Predicated region
    $region2: #{tpu_custom_call.1} parent=1 // pred_check
      _
    $region3: #{tpu_custom_call.1} parent=1 // pred_check_branch
      %9 = sbr.rel (0) target = $region5
    $region4: #{tpu_custom_call.1} parent=1 // pred_region
      %s11 = ssub.s32 256, 256
      %12 = vsyncadd [#allocation3], %s11
      %s14 = sshll.u32 [#allocation2], 4
      %s15 = int_to_ptr.vmem [resolvable:$true] %s14
      %17 = dma.hbm_to_vmem [thread:$0]  %s0, 256, %s15, [#allocation3]
    $region5: #{tpu_custom_call.1} parent=1 // pred_fallthru
      _
    // Predicated region
    $region6: #{tpu_custom_call.1} parent=1 // pred_check
      _
    $region7: #{tpu_custom_call.1} parent=1 // pred_check_branch
      %19 = sbr.rel (0) target = $region9
    $region8: #{tpu_custom_call.1} parent=1 // pred_region
      %20 = dma.done [#allocation3], 256
    $region9: #{tpu_custom_call.1} parent=1 // pred_fallthru
      _
    %v21 = vld [vmem:[#allocation2] sm:$0xff]
    %v22 = vld [vmem:[#allocation2 + $0x8] sm:$0xff]
    %v23 = vlaneseq
    %v24 = vand.u32 %v23, 127
    %v25 = vadd.s32 %v24, 128
    %vm26 = vcmp.lt.s32.totalorder %v24, 0
    %v27 = vsub.s32 0, %v24
    %v28 = vsel %vm26, %v27, %v24
    %v29 = vshrl.u32 %v28, 4
    %v30 = vand.u32 %v28, 15
    %v31 = vsub.s32 0, %v30
    %v32 = vsel %vm26, %v31, %v30
    %vm33 = vcmp.lt.s32.totalorder %v25, 0
    %v34 = vsub.s32 0, %v25
    %v35 = vsel %vm33, %v34, %v25
    %v36 = vshrl.u32 %v35, 4
    %v37 = vand.u32 %v35, 15
    %v38 = vsub.s32 0, %v37
    %v39 = vsel %vm33, %v38, %v37
    %vm40 = vcmp.ne.s32.totalorder %v32, 0
    %vm41 = vcmp.ne.s32.totalorder %v39, 0
    %vm42 = vcmp.lt.s32.totalorder %v32, 0
    %vm43 = vcmp.lt.s32.totalorder %v39, 0
    %vm44 = vmand %vm42, %vm40
    %vm45 = vmand %vm43, %vm41
    %v46 = vadd.s32 %v32, 16
    %v47 = vadd.s32 %v39, 16
    %v48 = vsel %vm44, %v46, %v32
    %v49 = vsel %vm45, %v47, %v39
    %vm50 = vcmp.eq.s32.totalorder %v48, 0
    %vm51 = vcmp.eq.s32.totalorder %v49, 0
    %52 = vrot.lane.b32.xlu0 %v21, 1
    %v53 = vpop.permute.xlu0 %52
    %54 = vrot.lane.b32.xlu0 %v22, 1
    %v55 = vpop.permute.xlu0 %54
    %vm56 = vcmp.lt.s32.totalorder %v24, 1
    %v57 = vsel %vm56, %v53, %v55
    %v58 = vsel %vm56, %v55, %v53
    %v59 = vsel %vm50, 0.0, %v58
    %v60 = vsel %vm51, 0.0, %v57
    %vm61 = vcmp.eq.s32.totalorder %v48, 15
    %vm62 = vcmp.eq.s32.totalorder %v49, 15
    %63 = vrot.lane.b32.xlu0 %v21, 127
    %v64 = vpop.permute.xlu0 %63
    %65 = vrot.lane.b32.xlu0 %v22, 127
    %v66 = vpop.permute.xlu0 %65
    %vm67 = vcmp.lt.s32.totalorder %v24, 127
    %v68 = vsel %vm67, %v64, %v66
    %v69 = vsel %vm67, %v66, %v64
    %v70 = vsel %vm61, 0.0, %v68
    %v71 = vsel %vm62, 0.0, %v69
    %v72 = vmul.f32 %v21, 2.0
    %v73 = vmul.f32 %v22, 2.0
    %v74 = vadd.f32 %v59, %v72
    %v75 = vadd.f32 %v60, %v73
    %v76 = vadd.f32 %v74, %v70
    %v77 = vadd.f32 %v75, %v71
    %vm78 = vcmp.lt.s32.totalorder %v24, 16
    %vm79 = vcmp.lt.s32.totalorder %v25, 16
    %80 = vrot.lane.b32.xlu0 %v76, 16
    %v81 = vpop.permute.xlu0 %80
    %82 = vrot.lane.b32.xlu0 %v77, 16
    %v83 = vpop.permute.xlu0 %82
    %v84 = vsel %vm78, %v81, %v83
    %v85 = vsel %vm78, %v83, %v81
    %v86 = vsel %vm78, 0.0, %v85
    %v87 = vsel %vm79, 0.0, %v84
    %vm88 = vcmp.ge.s32.totalorder %v24, 240
    %vm89 = vcmp.ge.s32.totalorder %v25, 240
    %90 = vrot.lane.b32.xlu0 %v76, 112
    %v91 = vpop.permute.xlu0 %90
    %92 = vrot.lane.b32.xlu0 %v77, 112
    %v93 = vpop.permute.xlu0 %92
    %vm94 = vcmp.lt.s32.totalorder %v24, 112
    %v95 = vsel %vm94, %v91, %v93
    %v96 = vsel %vm94, %v93, %v91
    %v97 = vsel %vm88, 0.0, %v95
    %v98 = vsel %vm89, 0.0, %v96
    %v99 = vadd.f32 %v86, %v97
    %v100 = vadd.f32 %v87, %v98
    %v101 = vmul.f32 %v99, 0.0625
    %v102 = vmul.f32 %v100, 0.0625
    %v103 = vmul.f32 %v76, 0.125
    %v104 = vmul.f32 %v77, 0.125
    %v105 = vadd.f32 %v101, %v103
    %v106 = vadd.f32 %v102, %v104
    %107 = vst [vmem:[#allocation5] sm:$0xff] %v105
    %108 = vst [vmem:[#allocation5 + $0x8] sm:$0xff] %v106
    // Predicated region
    $region10: #{tpu_custom_call.1} parent=1 // pred_check
      _
    $region11: #{tpu_custom_call.1} parent=1 // pred_check_branch
      %110 = sbr.rel (0) target = $region13
    $region12: #{tpu_custom_call.1} parent=1 // pred_region
      %s112 = ssub.s32 256, 256
      %113 = vsyncadd [#allocation4], %s112
      %s115 = sshll.u32 [#allocation5], 4
      %s116 = int_to_ptr.vmem [resolvable:$true] %s115
      %118 = dma.vmem_to_hbm [thread:$0]  %s116, 256, %s1, [#allocation4]
    $region13: #{tpu_custom_call.1} parent=1 // pred_fallthru
      _
    // Predicated region
    $region14: #{tpu_custom_call.1} parent=1 // pred_check
      _
    $region15: #{tpu_custom_call.1} parent=1 // pred_check_branch
      %120 = sbr.rel (0) target = $region17
    $region16: #{tpu_custom_call.1} parent=1 // pred_region
      %121 = dma.done [#allocation4], 256
    $region17: #{tpu_custom_call.1} parent=1 // pred_fallthru
      _
    %122 = vsyncpa [#allocation3], 1
    %123 = vsyncpa [#allocation4], 1

</llo_original>
